<compile_context>
chip_gen: v7x
topology: tpu7x:2x2x1
jax: 0.10.0
libtpu: 0.0.40
codegen_flags: <defaults>
</compile_context>

<pallas_src>
import functools

import jax
import jax.numpy as jnp
from jax import lax
from jax.experimental import pallas as pl
from jax.experimental.pallas import tpu as pltpu


def _peak_loss_kernel(*refs, k, rows, has_mask):
    if has_mask:
        hm_ref, pr_ref, mask_ref, out_ref = refs
    else:
        hm_ref, pr_ref, out_ref = refs
        mask_ref = None

    i = pl.program_id(0)

    # Load native-dtype tiles and upcast in-kernel (halves DMA bytes for bf16).
    hm = hm_ref[...].astype(jnp.float32)   # (TM, S)
    pr = pr_ref[...].astype(jnp.float32)   # (TM, S)
    tm, s = hm.shape

    # Single (1, S) lane iota; broadcasts against (TM, 1) operands below.
    col = lax.broadcasted_iota(jnp.int32, (1, s), 1)

    # Spatial argmax of the heatmap (first occurrence of the max), equivalent
    # to MaxPool1d(kernel=S, return_indices=True).
    hmax = jnp.max(hm, axis=-1, keepdims=True)                               # (TM, 1)
    idx = jnp.min(jnp.where(hm == hmax, col, s), axis=-1, keepdims=True)     # (TM, 1)

    # Softmax cross-entropy over the S spatial "classes" with target = idx.
    pmax = jnp.max(pr, axis=-1, keepdims=True)                               # (TM, 1)
    lse = pmax + jnp.log(
        jnp.sum(jnp.exp(pr - pmax), axis=-1, keepdims=True))                 # (TM, 1)
    tgt = jnp.sum(jnp.where(col == idx, pr, 0.0), axis=-1, keepdims=True)    # (TM, 1)
    loss = lse - tgt                                                         # (TM, 1)

    if has_mask:
        loss = loss * mask_ref[...].astype(jnp.float32)

    # Global row index: mask out (a) rows past B*K (partial last block padding)
    # and (b) the dropped last ("background") channel of every sample.
    # jnp.where is a select, so garbage/NaN from padded rows cannot leak.
    row = i * tm + lax.broadcasted_iota(jnp.int32, (tm, 1), 0)
    valid = jnp.logical_and(row < rows, (row % k) < (k - 1))
    loss = jnp.where(valid, loss, 0.0)

    # Lane-dense partial-sum block; reduced (and scaled by 1/denom) outside.
    out_ref[...] = jnp.broadcast_to(jnp.sum(loss), out_ref.shape)


def _pick_block_rows(rows, s, itemsize):
    """Largest sublane-aligned row tile that fits a conservative VMEM budget."""
    # 2 inputs x 2 pipeline buffers in native dtype, plus ~3 f32-sized compute
    # temps per row (upcast tiles + exp). 24 MiB budget keeps v7x (64 MiB VMEM)
    # comfortable even with the raised scoped limit.
    budget = 24 * 1024 * 1024
    bytes_per_row = s * (4 * itemsize + 3 * 4)
    tm = min(1024, max(8, budget // bytes_per_row))
    tm = max(8, (tm // 8) * 8)
    return tm


def peak_loss(pred, heatmap, mask=None, *, block_rows=None):
    """Pallas equivalent of PeakLoss(H, W).forward(pred, heatmap, mask)."""
    b, k, h, w = heatmap.shape
    if k < 2:
        raise ValueError("PeakLoss requires K >= 2 (the last channel is dropped).")
    s = h * w
    rows = b * k

    # Metadata-only reshapes; inputs stay in their native dtype in HBM.
    hm_flat = heatmap.reshape(rows, s)
    pr_flat = pred.reshape(rows, s)

    itemsize = max(jnp.dtype(pred.dtype).itemsize,
                   jnp.dtype(heatmap.dtype).itemsize)
    tm = _pick_block_rows(rows, s, itemsize) if block_rows is None else block_rows
    if tm >= rows:
        tm = rows                      # single full-extent block (any row count ok)
    else:
        assert tm % 8 == 0, "row tile must be sublane-aligned when tiling"
    nblocks = pl.cdiv(rows, tm)

    has_mask = mask is not None
    kernel = functools.partial(_peak_loss_kernel, k=k, rows=rows, has_mask=has_mask)

    in_specs = [
        pl.BlockSpec((tm, s), lambda i: (i, 0)),   # heatmap tile
        pl.BlockSpec((tm, s), lambda i: (i, 0)),   # pred tile
    ]
    args = [hm_flat, pr_flat]
    if has_mask:
        in_specs.append(pl.BlockSpec((tm, 1), lambda i: (i, 0)))
        args.append(mask.astype(jnp.float32).reshape(rows, 1))

    partials = pl.pallas_call(
        kernel,
        out_shape=jax.ShapeDtypeStruct((nblocks, 8, 128), jnp.float32),
        grid_spec=pltpu.PrefetchScalarGridSpec(
            num_scalar_prefetch=0,
            grid=(nblocks,),
            in_specs=in_specs,
            out_specs=pl.BlockSpec((1, 8, 128), lambda i: (i, 0, 0)),
        ),
        compiler_params=pltpu.CompilerParams(
            dimension_semantics=("parallel",),      # megacore-shardable on v7x
            vmem_limit_bytes=48 * 1024 * 1024,
        ),
    )(*args)

    total = jnp.sum(partials[:, 0, 0])
    return total / jnp.float32(b * (k - 1))


def peak_loss_ref(pred, heatmap, mask=None):
    """Pure-JAX reference matching the PyTorch forward."""
    b, k, h, w = heatmap.shape
    hm = heatmap.reshape(b, k, -1)
    idx = jnp.argmax(hm, axis=-1)[:, :-1]                       # (b, k-1)
    logits = pred.reshape(b, k, -1)[:, :-1, :]                  # (b, k-1, S)
    lse = jax.scipy.special.logsumexp(logits, axis=-1)
    tgt = jnp.take_along_axis(logits, idx[..., None], axis=-1)[..., 0]
    loss = lse - tgt
    if mask is not None:
        loss = loss * mask[:, :-1]
    return jnp.mean(loss)


if __name__ == "__main__":
    key = jax.random.PRNGKey(0)

    # Case 1: module-sized small inputs, with and without mask.
    B, C, H, W = 2, 4, 16, 16
    k1, k2, k3 = jax.random.split(key, 3)
    pred = jax.random.normal(k1, (B, C, H, W), dtype=jnp.float32)
    heatmap = jax.random.normal(k2, (B, C, H, W), dtype=jnp.float32)
    mask = jax.random.uniform(k3, (B, C), dtype=jnp.float32)

    out = jax.block_until_ready(peak_loss(pred, heatmap, mask))
    ref = jax.block_until_ready(peak_loss_ref(pred, heatmap, mask))
    assert jnp.allclose(out, ref, rtol=1e-5, atol=1e-5), (out, ref)

    out_nm = jax.block_until_ready(peak_loss(pred, heatmap))
    ref_nm = jax.block_until_ready(peak_loss_ref(pred, heatmap))
    assert jnp.allclose(out_nm, ref_nm, rtol=1e-5, atol=1e-5), (out_nm, ref_nm)

    # Case 2: exercise multi-block tiling with a partial last block (B*K=51
    # rows, 16-row tiles) to validate the global-row padding / channel masking.
    B2, C2 = 3, 17
    k4, k5, k6 = jax.random.split(k3, 3)
    pred2 = jax.random.normal(k4, (B2, C2, H, W), dtype=jnp.float32)
    heatmap2 = jax.random.normal(k5, (B2, C2, H, W), dtype=jnp.float32)
    mask2 = jax.random.uniform(k6, (B2, C2), dtype=jnp.float32)

    out2 = jax.block_until_ready(peak_loss(pred2, heatmap2, mask2, block_rows=16))
    ref2 = jax.block_until_ready(peak_loss_ref(pred2, heatmap2, mask2))
    assert jnp.allclose(out2, ref2, rtol=1e-5, atol=1e-5), (out2, ref2)

    print("KERNEL_OK")
</pallas_src>

<mosaic_0001>
module attributes {stable_mosaic.version = 11 : i64} {
  func.func @_peak_loss_kernel(%arg0: i32, %arg1: memref<8x256xf32, #tpu.memory_space<vmem>>, %arg2: memref<8x256xf32, #tpu.memory_space<vmem>>, %arg3: memref<8x1xf32, #tpu.memory_space<vmem>>, %arg4: memref<1x8x128xf32, #tpu.memory_space<vmem>>) attributes {dimension_semantics = [#tpu.dimension_semantics<parallel>], iteration_bounds = array<i64: 1>, scalar_prefetch = 0 : i64, scratch_operands = 0 : i64, tpu.core_type = #tpu.core_type<tc>, window_params = [{transform_indices = @transform_0, window_bounds = array<i64: 8, 256>}, {transform_indices = @transform_1, window_bounds = array<i64: 8, 256>}, {transform_indices = @transform_2, window_bounds = array<i64: 8, 1>}, {transform_indices = @transform_3, window_bounds = array<i64: 1, 8, 128>}]} {
    %c0 = arith.constant 0 : index
    %c0_0 = arith.constant 0 : index
    %0 = vector.load %arg1[%c0, %c0_0] : memref<8x256xf32, #tpu.memory_space<vmem>>, vector<8x256xf32>
    %c0_1 = arith.constant 0 : index
    %c0_2 = arith.constant 0 : index
    %1 = vector.load %arg2[%c0_1, %c0_2] : memref<8x256xf32, #tpu.memory_space<vmem>>, vector<8x256xf32>
    %2 = tpu.iota {dimensions = array<i32: 1>} : vector<1x256xi32>
    %cst = arith.constant dense<0xFF800000> : vector<8xf32>
    %3 = vector.multi_reduction <maximumf>, %0, %cst [1] : vector<8x256xf32> to vector<8xf32>
    %4 = vector.shape_cast %3 : vector<8xf32> to vector<8x1xf32>
    %5 = vector.broadcast %4 : vector<8x1xf32> to vector<8x256xf32>
    %6 = arith.cmpf oeq, %0, %5 : vector<8x256xf32>
    %c256_i32 = arith.constant 256 : i32
    %7 = vector.shape_cast %2 : vector<1x256xi32> to vector<1x256xi32>
    %8 = vector.broadcast %7 : vector<1x256xi32> to vector<8x256xi32>
    %9 = vector.broadcast %c256_i32 : i32 to vector<8x256xi32>
    %10 = arith.select %6, %8, %9 : vector<8x256xi1>, vector<8x256xi32>
    %cst_3 = arith.constant dense<2147483647> : vector<8xi32>
    %11 = vector.multi_reduction <minsi>, %10, %cst_3 [1] : vector<8x256xi32> to vector<8xi32>
    %12 = vector.shape_cast %11 : vector<8xi32> to vector<8x1xi32>
    %cst_4 = arith.constant dense<0xFF800000> : vector<8xf32>
    %13 = vector.multi_reduction <maximumf>, %1, %cst_4 [1] : vector<8x256xf32> to vector<8xf32>
    %14 = vector.shape_cast %13 : vector<8xf32> to vector<8x1xf32>
    %15 = vector.broadcast %14 : vector<8x1xf32> to vector<8x256xf32>
    %16 = arith.subf %1, %15 : vector<8x256xf32>
    %17 = math.exp %16 : vector<8x256xf32>
    %cst_5 = arith.constant dense<0.000000e+00> : vector<8xf32>
    %18 = vector.multi_reduction <add>, %17, %cst_5 [1] : vector<8x256xf32> to vector<8xf32>
    %19 = vector.shape_cast %18 : vector<8xf32> to vector<8x1xf32>
    %20 = math.log %19 : vector<8x1xf32>
    %21 = arith.addf %14, %20 : vector<8x1xf32>
    %22 = vector.broadcast %2 : vector<1x256xi32> to vector<8x256xi32>
    %23 = vector.broadcast %12 : vector<8x1xi32> to vector<8x256xi32>
    %24 = arith.cmpi eq, %22, %23 : vector<8x256xi32>
    %cst_6 = arith.constant 0.000000e+00 : f32
    %25 = vector.broadcast %cst_6 : f32 to vector<8x256xf32>
    %26 = arith.select %24, %1, %25 : vector<8x256xi1>, vector<8x256xf32>
    %cst_7 = arith.constant dense<0.000000e+00> : vector<8xf32>
    %27 = vector.multi_reduction <add>, %26, %cst_7 [1] : vector<8x256xf32> to vector<8xf32>
    %28 = vector.shape_cast %27 : vector<8xf32> to vector<8x1xf32>
    %29 = arith.subf %21, %28 : vector<8x1xf32>
    %c0_8 = arith.constant 0 : index
    %c0_9 = arith.constant 0 : index
    %30 = vector.load %arg3[%c0_8, %c0_9] : memref<8x1xf32, #tpu.memory_space<vmem>>, vector<8x1xf32>
    %31 = arith.mulf %29, %30 : vector<8x1xf32>
    %c8_i32 = arith.constant 8 : i32
    %32 = arith.muli %arg0, %c8_i32 : i32
    %33 = tpu.iota {dimensions = array<i32: 0>} : vector<8x1xi32>
    %34 = vector.broadcast %32 : i32 to vector<8x1xi32>
    %35 = arith.addi %34, %33 : vector<8x1xi32>
    %c8_i32_10 = arith.constant 8 : i32
    %36 = vector.broadcast %c8_i32_10 : i32 to vector<8x1xi32>
    %37 = arith.cmpi slt, %35, %36 : vector<8x1xi32>
    %c4_i32 = arith.constant 4 : i32
    %c0_i32 = arith.constant 0 : i32
    %38 = arith.cmpi eq, %c4_i32, %c0_i32 : i32
    %c1_i32 = arith.constant 1 : i32
    %39 = arith.select %38, %c1_i32, %c4_i32 : i32
    %40 = vector.broadcast %39 : i32 to vector<8x1xi32>
    %41 = arith.remsi %35, %40 : vector<8x1xi32>
    %c0_i32_11 = arith.constant 0 : i32
    %42 = vector.broadcast %c0_i32_11 : i32 to vector<8x1xi32>
    %43 = arith.cmpi ne, %41, %42 : vector<8x1xi32>
    %c0_i32_12 = arith.constant 0 : i32
    %44 = vector.broadcast %c0_i32_12 : i32 to vector<8x1xi32>
    %45 = arith.cmpi slt, %41, %44 : vector<8x1xi32>
    %c0_i32_13 = arith.constant 0 : i32
    %46 = arith.cmpi slt, %39, %c0_i32_13 : i32
    %47 = vector.broadcast %46 : i1 to vector<8x1xi1>
    %48 = vector.broadcast %47 : vector<8x1xi1> to vector<8x1xi1>
    %49 = arith.xori %45, %48 : vector<8x1xi1>
    %50 = arith.andi %49, %43 : vector<8x1xi1>
    %51 = vector.broadcast %39 : i32 to vector<8x1xi32>
    %52 = arith.addi %41, %51 : vector<8x1xi32>
    %53 = arith.select %50, %52, %41 : vector<8x1xi1>, vector<8x1xi32>
    %c3_i32 = arith.constant 3 : i32
    %54 = vector.broadcast %c3_i32 : i32 to vector<8x1xi32>
    %55 = arith.cmpi slt, %53, %54 : vector<8x1xi32>
    %56 = arith.andi %37, %55 : vector<8x1xi1>
    %cst_14 = arith.constant 0.000000e+00 : f32
    %57 = vector.broadcast %cst_14 : f32 to vector<8x1xf32>
    %58 = arith.select %56, %31, %57 : vector<8x1xi1>, vector<8x1xf32>
    %59 = vector.shape_cast %58 : vector<8x1xf32> to vector<1x8x1xf32>
    %cst_15 = arith.constant dense<0.000000e+00> : vector<1xf32>
    %60 = vector.multi_reduction <add>, %59, %cst_15 [1, 2] : vector<1x8x1xf32> to vector<1xf32>
    %61 = vector.shape_cast %60 : vector<1xf32> to vector<1x1x1xf32>
    %62 = vector.extract %61[0, 0, 0] : f32 from vector<1x1x1xf32>
    %63 = vector.broadcast %62 : f32 to vector<1x8x128xf32>
    %c0_16 = arith.constant 0 : index
    %c0_17 = arith.constant 0 : index
    %c0_18 = arith.constant 0 : index
    %64 = vector.load %arg4[%c0_16, %c0_17, %c0_18] : memref<1x8x128xf32, #tpu.memory_space<vmem>>, vector<1x8x128xf32>
    tpu.vector_store %arg4[%c0_16, %c0_17, %c0_18], %63 {strides = array<i32>} : memref<1x8x128xf32, #tpu.memory_space<vmem>>, vector<1x8x128xf32>,
    return
  }
  func.func @transform_0(%arg0: i32) -> (i32, i32) {
    %c0_i32 = arith.constant 0 : i32
    %c0_i32_0 = arith.constant 0 : i32
    return %arg0, %c0_i32 : i32, i32
  }
  func.func @transform_1(%arg0: i32) -> (i32, i32) {
    %c0_i32 = arith.constant 0 : i32
    %c0_i32_0 = arith.constant 0 : i32
    return %arg0, %c0_i32 : i32, i32
  }
  func.func @transform_2(%arg0: i32) -> (i32, i32) {
    %c0_i32 = arith.constant 0 : i32
    %c0_i32_0 = arith.constant 0 : i32
    return %arg0, %c0_i32 : i32, i32
  }
  func.func @transform_3(%arg0: i32) -> (i32, i32, i32) {
    %c0_i32 = arith.constant 0 : i32
    %c0_i32_0 = arith.constant 0 : i32
    %c0_i32_1 = arith.constant 0 : i32
    return %arg0, %c0_i32, %c0_i32_0 : i32, i32, i32
  }
}

</mosaic_0001>

<llo_original>
// kernel: tpu_custom_call.1
$region0: #{tpu_custom_call.1}
  #allocation0 [shape = 'u32[]', space=smem, size = 0x4, offset = 0x4, fixed_abs, tag = 'smem constant byte address 0x4 - core index']
  #allocation1 [shape = 'u32[144,128]{1,0:T(1,128)}', space=vmem, size = 0x12000, scoped, tag = 'internal scratch']
  %s0 = inlined_call_operand.hbm [shape: f32[8,256], index: 0, kind: input, shape index: {}]
  %s1 = inlined_call_operand.hbm [shape: f32[8,256], index: 1, kind: input, shape index: {}]
  %s2 = inlined_call_operand.vmem [shape: f32[8,1], index: 2, kind: input, shape index: {}]
  %s3 = inlined_call_operand.hbm [shape: f32[1,8,128], index: 3, kind: output, shape index: {}]
  %s4 = sld [smem:[#allocation0]]
  $region30: #{tpu_custom_call.1} parent=0
    _
  %s6 = ssub.s32 1, %s4
  %s7 = scalar_select 0, %s6, %s4
  $region1: #{tpu_custom_call.1} parent=0
    #allocation2 [shape = 'u8[8192]{0}', space=vmem, size = 0x2000, scoped, tag = 'input window, operand 0, single buffered']
    #allocation3 [shape = 's32[1]{0}', space=sflag, size = 0x4, scoped, tag = 'scoped memory for tpu_custom_call.1']
    #allocation4 [shape = 's32[1]{0}', space=sflag, size = 0x4, scoped, tag = 'scoped memory for tpu_custom_call.1']
    #allocation5 [shape = 'u8[8192]{0}', space=vmem, size = 0x2000, scoped, tag = 'input window, operand 1, single buffered']
    #allocation6 [shape = 's32[1]{0}', space=sflag, size = 0x4, scoped, tag = 'scoped memory for tpu_custom_call.1']
    #allocation7 [shape = 'u8[4096]{0}', space=vmem, size = 0x1000, scoped, tag = 'output window, operand 0, single buffered']
    %8 = vsyncpa [#allocation3], 0
    %9 = vsyncpa [#allocation6], 0
    %10 = vsyncpa [#allocation4], 0
    // Predicated region
    $region2: #{tpu_custom_call.1} parent=1 // pred_check
      _
    $region3: #{tpu_custom_call.1} parent=1 // pred_check_branch
      %12 = sbr.rel (0) target = $region5
    $region4: #{tpu_custom_call.1} parent=1 // pred_region
      %s14 = ssub.s32 256, 256
      %15 = vsyncadd [#allocation3], %s14
      %s17 = sshll.u32 [#allocation2], 4
      %s18 = int_to_ptr.vmem [resolvable:$true] %s17
      %20 = dma.hbm_to_vmem [thread:$0]  %s0, 256, %s18, [#allocation3]
    $region5: #{tpu_custom_call.1} parent=1 // pred_fallthru
      _
    // Predicated region
    $region6: #{tpu_custom_call.1} parent=1 // pred_check
      _
    $region7: #{tpu_custom_call.1} parent=1 // pred_check_branch
      %22 = sbr.rel (0) target = $region9
    $region8: #{tpu_custom_call.1} parent=1 // pred_region
      %s24 = ssub.s32 256, 256
      %25 = vsyncadd [#allocation6], %s24
      %s27 = sshll.u32 [#allocation5], 4
      %s28 = int_to_ptr.vmem [resolvable:$true] %s27
      %30 = dma.hbm_to_vmem [thread:$0]  %s1, 256, %s28, [#allocation6]
    $region9: #{tpu_custom_call.1} parent=1 // pred_fallthru
      _
    // Predicated region
    $region10: #{tpu_custom_call.1} parent=1 // pred_check
      _
    $region11: #{tpu_custom_call.1} parent=1 // pred_check_branch
      %32 = sbr.rel (0) target = $region13
    $region12: #{tpu_custom_call.1} parent=1 // pred_region
      _
    $region13: #{tpu_custom_call.1} parent=1 // pred_fallthru
      _
    // Predicated region
    $region14: #{tpu_custom_call.1} parent=1 // pred_check
      _
    $region15: #{tpu_custom_call.1} parent=1 // pred_check_branch
      %34 = sbr.rel (0) target = $region17
    $region16: #{tpu_custom_call.1} parent=1 // pred_region
      %35 = dma.done [#allocation3], 256
    $region17: #{tpu_custom_call.1} parent=1 // pred_fallthru
      _
    // Predicated region
    $region18: #{tpu_custom_call.1} parent=1 // pred_check
      _
    $region19: #{tpu_custom_call.1} parent=1 // pred_check_branch
      %37 = sbr.rel (0) target = $region21
    $region20: #{tpu_custom_call.1} parent=1 // pred_region
      %38 = dma.done [#allocation6], 256
    $region21: #{tpu_custom_call.1} parent=1 // pred_fallthru
      _
    %v39 = vld [vmem:[#allocation2] sm:$0xff]
    %v40 = vld [vmem:[#allocation2 + $0x8] sm:$0xff]
    %v41 = vld [vmem:[#allocation5] sm:$0xff]
    %v42 = vld [vmem:[#allocation5 + $0x8] sm:$0xff]
    %v43 = vlaneseq
    %v44 = vand.u32 %v43, 127
    %v45 = vadd.s32 %v44, 128
    %v46 = vmax.f32 %v39, %v40
    %47 = vmax.xlane.f32.xlu0 %v46
    %v48 = vpop.xlane.xlu0 %47
    %vm49 = vcmp.eq.f32.partialorder %v39, %v48
    %vm50 = vcmp.eq.f32.partialorder %v40, %v48
    %v51 = vsel %vm49, %v44, 256
    %v52 = vsel %vm50, %v45, 256
    %vm53 = vcmp.lt.s32.totalorder %v51, %v52
    %v54 = vsel %vm53, %v51, %v52
    %v55 = vand.u32 %v54, 65535
    %v56 = vshra.s32 %v54, 16
    %v57 = vcvt.s32.f32 %v55
    %v58 = vcvt.s32.f32 %v56
    %59 = vmin.xlane.f32.xlu0 %v58
    %v60 = vpop.xlane.xlu0 %59
    %vm61 = vcmp.eq.f32.partialorder %v58, %v60
    %v62 = vsel %vm61, %v57, inf
    %63 = vmin.xlane.f32.xlu0 %v62
    %v64 = vpop.xlane.xlu0 %63
    %v65 = vcvt.f32.s32 %v64
    %v66 = vcvt.f32.s32 %v60
    %v67 = vshll.u32 %v66, 16
    %v68 = vadd.s32 %v67, %v65
    %v69 = vmax.f32 %v41, %v42
    %70 = vmax.xlane.f32.xlu0 %v69
    %v71 = vpop.xlane.xlu0 %70
    %v72 = vsub.f32 %v41, %v71
    %v73 = vsub.f32 %v42, %v71
    %v74 = vmul.f32 %v72, 1.442695
    %v75 = vpow.pop %v74
    %v76 = vmul.f32 %v73, 1.442695
    %v77 = vpow.pop %v76
    %v78 = vadd.f32 %v75, %v77
    %79 = vadd.xlane.f32.xlu0 %v78
    %v80 = vpop.xlane.xlu0 %79
    %v81 = vlog2.pop %v80
    %v82 = vmul.f32 %v81, 0.6931472
    %v83 = vadd.f32 %v71, %v82
    %vm84 = vcmp.eq.s32.totalorder %v44, %v68
    %vm85 = vcmp.eq.s32.totalorder %v45, %v68
    %v86 = vsel %vm84, %v41, 0.0
    %v87 = vsel %vm85, %v42, 0.0
    %v88 = vadd.f32 %v86, %v87
    %89 = vadd.xlane.f32.xlu0 %v88
    %v90 = vpop.xlane.xlu0 %89
    %v91 = vsub.f32 %v83, %v90
    %v92 = vld [vmem:[%s2] sm:$0xff]
    %v93 = vmul.f32 %v91, %v92
    %s94 = smul.u32 0, 8
    %v95 = vlaneseq
    %v96 = vshrl.u32 %v95, 7
    %v97 = vstv %s94
    %v98 = vadd.s32 %v97, %v96
    %vm99 = vcmp.lt.s32.totalorder %v98, 8
    %vm100 = vcmp.lt.s32.totalorder %v98, 0
    %v101 = vsub.s32 0, %v98
    %v102 = vsel %vm100, %v101, %v98
    %v103 = vshrl.u32 %v102, 2
    %v104 = vand.u32 %v102, 3
    %v105 = vsub.s32 0, %v104
    %v106 = vsel %vm100, %v105, %v104
    %vm107 = vcmp.ne.s32.totalorder %v106, 0
    %vm108 = vcmp.lt.s32.totalorder %v106, 0
    %vm109 = vmand %vm108, %vm107
    %v110 = vadd.s32 %v106, 4
    %v111 = vsel %vm109, %v110, %v106
    %vm112 = vcmp.lt.s32.totalorder %v111, 3
    %vm113 = vmand %vm99, %vm112
    %v114 = vsel %vm113, %v93, 0.0
    %vm115 = vcmask 7168
    %v116 = vsel %vm115, %v114, 0.0
    %117 = vadd.xlane.f32.xlu0 %v116
    %v118 = vpop.xlane.xlu0 %117
    %v119 = vrot.slane %v118, 4
    %v120 = vadd.f32 %v118, %v119
    %v121 = vrot.slane %v120, 2
    %v122 = vadd.f32 %v120, %v121
    %v123 = vrot.slane %v122, 1
    %v124 = vadd.f32 %v122, %v123
    %s125 = vtos %v124
    %v126 = vstv %s125
    %127 = vst [vmem:[#allocation7] sm:$0xff] %v126
    // Predicated region
    $region22: #{tpu_custom_call.1} parent=1 // pred_check
      _
    $region23: #{tpu_custom_call.1} parent=1 // pred_check_branch
      %129 = sbr.rel (0) target = $region25
    $region24: #{tpu_custom_call.1} parent=1 // pred_region
      %s131 = ssub.s32 128, 128
      %132 = vsyncadd [#allocation4], %s131
      %s134 = sshll.u32 [#allocation7], 4
      %s135 = int_to_ptr.vmem [resolvable:$true] %s134
      %137 = dma.vmem_to_hbm [thread:$0]  %s135, 128, %s3, [#allocation4]
    $region25: #{tpu_custom_call.1} parent=1 // pred_fallthru
      _
    // Predicated region
    $region26: #{tpu_custom_call.1} parent=1 // pred_check
      _
    $region27: #{tpu_custom_call.1} parent=1 // pred_check_branch
      %139 = sbr.rel (0) target = $region29
    $region28: #{tpu_custom_call.1} parent=1 // pred_region
      %140 = dma.done [#allocation4], 128
    $region29: #{tpu_custom_call.1} parent=1 // pred_fallthru
      _
    %141 = vsyncpa [#allocation3], 1
    %142 = vsyncpa [#allocation6], 1
    %143 = vsyncpa [#allocation4], 1

</llo_original>
